<compile_context>
chip_gen: v6e
topology: v6e:2x2x1
jax: 0.10.0
libtpu: 0.0.40
codegen_flags: <defaults>
</compile_context>

<pallas_src>
import functools

import jax
import jax.numpy as jnp
from jax import lax
from jax.experimental import pallas as pl
from jax.experimental.pallas import tpu as pltpu


def _round_up(n, m):
    return ((n + m - 1) // m) * m


def _choose_row_tile(rows, block_rows):
    """Pick a row tile: multiple of 8, <= block_rows, padding waste <~12.5% of
    the real rows, and >= 2 grid steps when rows allow (keeps both v7x
    TensorCores busy). Returns (tile, padded_rows)."""
    rows8 = _round_up(rows, 8)
    tile = max(8, (min(block_rows, rows8) // 8) * 8)
    if rows8 >= 16:  # leave room for at least two grid steps (v7x megacore)
        tile = min(tile, max(8, ((rows8 // 2) // 8) * 8))
    while tile > 8 and _round_up(rows8, tile) - rows8 > rows8 // 8:
        tile = max(8, ((tile // 2) // 8) * 8)
    return tile, _round_up(rows8, tile)


def _resident_spec(block_shape, index_map):
    """BlockSpec for a constant-index-map operand: single buffer (the block
    never changes across the grid, so double-buffering is pure VMEM waste)."""
    try:
        return pl.BlockSpec(block_shape, index_map, pipeline_mode=pl.Buffered(1))
    except (TypeError, AttributeError):  # older jax without pipeline_mode
        return pl.BlockSpec(block_shape, index_map)


# --------------------- fused LayerNorm + Linear kernel ----------------------

def _prenorm_linear_kernel(x_ref, w_ref, bias_ref, o_ref, *, eps, matmul_dtype):
    # x_ref:    (tile_rows, dim)   current row tile (pipelined)
    # w_ref:    (dim, dim_out)     resident, gamma-folded weight (matmul_dtype)
    # bias_ref: (1, dim_out)       resident, beta/bias-folded bias (f32)
    x = x_ref[...].astype(jnp.float32)
    mean = jnp.mean(x, axis=-1, keepdims=True)
    centered = x - mean
    var = jnp.mean(centered * centered, axis=-1, keepdims=True)
    xhat = centered * lax.rsqrt(var + eps)                 # f32 LN (VPU/EUP)

    acc = jnp.dot(xhat.astype(matmul_dtype), w_ref[...],   # MXU, f32 accum
                  preferred_element_type=jnp.float32)
    acc = acc + bias_ref[...].astype(jnp.float32)
    o_ref[...] = acc.astype(o_ref.dtype)


def prenorm_linear(x, gamma, beta, w, bias, *, eps=1e-5, block_rows=1024,
                   matmul_dtype=jnp.bfloat16, out_dtype=jnp.bfloat16):
    """Fused PreNorm with fn = Linear: LayerNorm(x) @ w + bias.

    x: (batch, num_tokens, dim); w: (dim, dim_out); bias: (dim_out,).
    gamma/beta are folded into w/bias in f32, so the kernel only normalizes
    and does the matmul.  Output defaults to bf16 (halves HBM writeback).
    """
    B, N, D = x.shape
    Dk, Do = w.shape
    assert Dk == D, "weight input dim must match feature dim"

    rows = B * N
    x2 = x.reshape(rows, D)

    tile, rows_p = _choose_row_tile(rows, block_rows)
    if rows_p != rows:
        # Padded rows produce finite garbage and are sliced off; waste bounded
        # to <~12.5% of real rows by _choose_row_tile.
        x2 = jnp.pad(x2, ((0, rows_p - rows), (0, 0)))

    # Fold the LayerNorm affine into the linear layer (exact, done in f32
    # before the bf16 cast):
    #   (xhat*gamma + beta) @ w + b = xhat @ (gamma[:,None]*w) + (beta @ w + b)
    w_f32 = w.astype(jnp.float32)
    w_folded = (gamma.astype(jnp.float32)[:, None] * w_f32).astype(matmul_dtype)
    bias_folded = (beta.astype(jnp.float32) @ w_f32
                   + bias.astype(jnp.float32)).reshape(1, Do)

    x_isz = jnp.dtype(x2.dtype).itemsize
    w_isz = jnp.dtype(matmul_dtype).itemsize
    o_isz = jnp.dtype(out_dtype).itemsize
    cost = pl.CostEstimate(
        flops=2 * rows_p * D * Do + 7 * rows_p * D,
        transcendentals=rows_p,                       # one rsqrt per row
        bytes_accessed=(rows_p * D * x_isz            # x read
                        + D * Do * w_isz              # weight read once (resident)
                        + rows_p * Do * o_isz         # output write
                        + Do * 4))                    # bias

    # x/out double-buffered, weight+bias single-buffered, plus Mosaic headroom.
    vmem_bytes = (2 * tile * D * x_isz + 2 * tile * Do * o_isz
                  + D * Do * w_isz + Do * 4 + (4 << 20))
    vmem_limit = int(min(max(vmem_bytes, 16 << 20), 64 << 20))

    kernel = functools.partial(_prenorm_linear_kernel, eps=eps,
                               matmul_dtype=matmul_dtype)
    out = pl.pallas_call(
        kernel,
        out_shape=jax.ShapeDtypeStruct((rows_p, Do), out_dtype),
        grid_spec=pltpu.PrefetchScalarGridSpec(
            num_scalar_prefetch=0,
            grid=(rows_p // tile,),
            in_specs=[
                pl.BlockSpec((tile, D), lambda i: (i, 0)),   # x tile (pipelined)
                _resident_spec((Dk, Do), lambda i: (0, 0)),  # weight, resident
                _resident_spec((1, Do), lambda i: (0, 0)),   # bias, resident
            ],
            out_specs=pl.BlockSpec((tile, Do), lambda i: (i, 0)),
        ),
        compiler_params=pltpu.CompilerParams(
            dimension_semantics=("parallel",),
            vmem_limit_bytes=vmem_limit),
        cost_estimate=cost,
    )(x2, w_folded, bias_folded)

    return out[:rows].reshape(B, N, Do)


# --------------- generic path: LayerNorm (+ fused elementwise fn) -----------

def _layernorm_act_kernel(x_ref, lnp_ref, o_ref, *, eps, act):
    x = x_ref[...].astype(jnp.float32)
    mean = jnp.mean(x, axis=-1, keepdims=True)
    centered = x - mean
    var = jnp.mean(centered * centered, axis=-1, keepdims=True)
    y = centered * lax.rsqrt(var + eps) * lnp_ref[0:1, :] + lnp_ref[1:2, :]
    if act is not None:
        y = act(y)                      # elementwise fn fused (EUP/VPU slack)
    o_ref[...] = y.astype(o_ref.dtype)


def layernorm_pallas(x2d, gamma, beta, *, eps=1e-5, block_rows=1024, act=None,
                     out_dtype=None):
    rows, D = x2d.shape
    out_dtype = out_dtype or x2d.dtype
    tile, rows_p = _choose_row_tile(rows, block_rows)
    xp = jnp.pad(x2d, ((0, rows_p - rows), (0, 0))) if rows_p != rows else x2d
    ln_params = jnp.stack([gamma, beta]).astype(jnp.float32)    # (2, D)

    x_isz = jnp.dtype(xp.dtype).itemsize
    o_isz = jnp.dtype(out_dtype).itemsize
    vmem_bytes = 2 * tile * D * (x_isz + o_isz) + 2 * D * 4 + (4 << 20)
    vmem_limit = int(min(max(vmem_bytes, 16 << 20), 64 << 20))

    out = pl.pallas_call(
        functools.partial(_layernorm_act_kernel, eps=eps, act=act),
        out_shape=jax.ShapeDtypeStruct((rows_p, D), out_dtype),
        grid_spec=pltpu.PrefetchScalarGridSpec(
            num_scalar_prefetch=0,
            grid=(rows_p // tile,),
            in_specs=[pl.BlockSpec((tile, D), lambda i: (i, 0)),
                      _resident_spec((2, D), lambda i: (0, 0))],
            out_specs=pl.BlockSpec((tile, D), lambda i: (i, 0)),
        ),
        compiler_params=pltpu.CompilerParams(
            dimension_semantics=("parallel",),
            vmem_limit_bytes=vmem_limit),
    )(xp, ln_params)
    return out[:rows]


def prenorm(x, gamma, beta, fn, *, fuse_elementwise=False, **kwargs):
    """Generic PreNorm: fn(LayerNorm(x), **kwargs) for arbitrary JAX `fn`.

    If `fn` is purely elementwise (gelu, relu, ...), set fuse_elementwise=True
    to apply it inside the LayerNorm kernel — the normalized tensor then never
    round-trips through HBM.
    """
    B, N, D = x.shape
    if fuse_elementwise:
        y = layernorm_pallas(x.reshape(B * N, D), gamma, beta,
                             act=lambda v: fn(v, **kwargs))
        return y.reshape(B, N, D)
    normed = layernorm_pallas(x.reshape(B * N, D), gamma, beta)
    return fn(normed.reshape(B, N, D), **kwargs)


if __name__ == "__main__":
    # Small shapes consistent with the module; dim=128 keeps tiles lane-dense.
    batch, num_tokens, dim = 2, 8, 128

    key = jax.random.PRNGKey(0)
    kx, kw, kb, kg, kbt = jax.random.split(key, 5)

    x = jax.random.normal(kx, (batch, num_tokens, dim), dtype=jnp.float32)

    # LayerNorm params: perturbed from the PyTorch default (weight=1, bias=0)
    # so the gamma/beta -> weight/bias fold is actually exercised.
    gamma = 1.0 + 0.1 * jax.random.normal(kg, (dim,), dtype=jnp.float32)
    beta = 0.05 * jax.random.normal(kbt, (dim,), dtype=jnp.float32)

    # Params for the example wrapped `fn` (a Linear layer).
    w = jax.random.normal(kw, (dim, dim), dtype=jnp.float32) * 0.02
    b = jax.random.normal(kb, (dim,), dtype=jnp.float32) * 0.02

    # Pure-JAX reference.
    mean = jnp.mean(x, axis=-1, keepdims=True)
    var = jnp.mean((x - mean) ** 2, axis=-1, keepdims=True)
    ref_norm = (x - mean) / jnp.sqrt(var + 1e-5) * gamma + beta

    # --- fused PreNorm(Linear) hot path (bf16 MXU operands, bf16 output) ----
    out = prenorm_linear(x, gamma, beta, w, b)
    jax.block_until_ready(out)
    ref = jnp.einsum("bnd,de->bne", ref_norm, w) + b
    assert out.shape == ref.shape and out.dtype == jnp.bfloat16
    # bf16 MXU operands + bf16 output with f32 accumulation -> loose tolerance.
    assert jnp.allclose(out.astype(jnp.float32), ref, atol=3e-2, rtol=3e-2), \
        "fused prenorm+linear mismatch vs reference"

    # --- generic PreNorm path: elementwise fn fused into the LN kernel ------
    out2 = prenorm(x, gamma, beta, jax.nn.gelu, fuse_elementwise=True)
    jax.block_until_ready(out2)
    ref2 = jax.nn.gelu(ref_norm)
    assert jnp.allclose(out2, ref2, atol=1e-4, rtol=1e-4), \
        "generic prenorm mismatch vs reference"

    # --- generic PreNorm path with an arbitrary (non-fusable) wrapped fn ----
    fn_arbitrary = lambda t: jnp.flip(t, axis=1) * 0.5
    out3 = prenorm(x, gamma, beta, fn_arbitrary)
    jax.block_until_ready(out3)
    ref3 = fn_arbitrary(ref_norm)
    assert jnp.allclose(out3, ref3, atol=1e-4, rtol=1e-4), \
        "arbitrary-fn prenorm mismatch vs reference"

    print("KERNEL_OK")
</pallas_src>

<mosaic_0001>
module attributes {stable_mosaic.version = 11 : i64} {
  func.func @_prenorm_linear_kernel(%arg0: i32, %arg1: memref<8x128xf32, #tpu.memory_space<vmem>>, %arg2: memref<128x128xbf16, #tpu.memory_space<vmem>>, %arg3: memref<1x128xf32, #tpu.memory_space<vmem>>, %arg4: memref<8x128xbf16, #tpu.memory_space<vmem>>) attributes {dimension_semantics = [#tpu.dimension_semantics<parallel>], iteration_bounds = array<i64: 2>, scalar_prefetch = 0 : i64, scratch_operands = 0 : i64, tpu.core_type = #tpu.core_type<tc>, window_params = [{transform_indices = @transform_0, window_bounds = array<i64: 8, 128>}, {pipeline_mode = #tpu.pipeline_mode<synchronous>, transform_indices = @transform_1, window_bounds = array<i64: 128, 128>}, {pipeline_mode = #tpu.pipeline_mode<synchronous>, transform_indices = @transform_2, window_bounds = array<i64: 1, 128>}, {transform_indices = @transform_3, window_bounds = array<i64: 8, 128>}]} {
    %c0 = arith.constant 0 : index
    %c0_0 = arith.constant 0 : index
    %0 = vector.load %arg1[%c0, %c0_0] : memref<8x128xf32, #tpu.memory_space<vmem>>, vector<8x128xf32>
    %cst = arith.constant dense<0.000000e+00> : vector<8xf32>
    %1 = vector.multi_reduction <add>, %0, %cst [1] : vector<8x128xf32> to vector<8xf32>
    %2 = vector.shape_cast %1 : vector<8xf32> to vector<8x1xf32>
    %cst_1 = arith.constant 1.280000e+02 : f32
    %3 = vector.broadcast %cst_1 : f32 to vector<8x1xf32>
    %4 = arith.divf %2, %3 : vector<8x1xf32>
    %5 = vector.broadcast %4 : vector<8x1xf32> to vector<8x128xf32>
    %6 = arith.subf %0, %5 : vector<8x128xf32>
    %7 = arith.mulf %6, %6 : vector<8x128xf32>
    %cst_2 = arith.constant dense<0.000000e+00> : vector<8xf32>
    %8 = vector.multi_reduction <add>, %7, %cst_2 [1] : vector<8x128xf32> to vector<8xf32>
    %9 = vector.shape_cast %8 : vector<8xf32> to vector<8x1xf32>
    %cst_3 = arith.constant 1.280000e+02 : f32
    %10 = vector.broadcast %cst_3 : f32 to vector<8x1xf32>
    %11 = arith.divf %9, %10 : vector<8x1xf32>
    %cst_4 = arith.constant 9.99999974E-6 : f32
    %12 = vector.broadcast %cst_4 : f32 to vector<8x1xf32>
    %13 = arith.addf %11, %12 : vector<8x1xf32>
    %14 = math.rsqrt %13 : vector<8x1xf32>
    %15 = vector.broadcast %14 : vector<8x1xf32> to vector<8x128xf32>
    %16 = arith.mulf %6, %15 : vector<8x128xf32>
    %17 = arith.truncf %16 : vector<8x128xf32> to vector<8x128xbf16>
    %c0_5 = arith.constant 0 : index
    %c0_6 = arith.constant 0 : index
    %18 = vector.load %arg2[%c0_5, %c0_6] : memref<128x128xbf16, #tpu.memory_space<vmem>>, vector<128x128xbf16>
    %cst_7 = arith.constant dense<0.000000e+00> : vector<8x128xf32>
    %19 = tpu.matmul %17, %18, %cst_7 {dimension_numbers = #tpu.dot_dimension_numbers<[1], [0], [0], [1], [0, 0, 1, 1], [], []>} : vector<8x128xbf16>, vector<128x128xbf16>, vector<8x128xf32> -> vector<8x128xf32>
    %c0_8 = arith.constant 0 : index
    %c0_9 = arith.constant 0 : index
    %20 = vector.load %arg3[%c0_8, %c0_9] : memref<1x128xf32, #tpu.memory_space<vmem>>, vector<1x128xf32>
    %21 = vector.broadcast %20 : vector<1x128xf32> to vector<8x128xf32>
    %22 = arith.addf %19, %21 : vector<8x128xf32>
    %23 = arith.truncf %22 : vector<8x128xf32> to vector<8x128xbf16>
    %c0_10 = arith.constant 0 : index
    %c0_11 = arith.constant 0 : index
    %24 = vector.load %arg4[%c0_10, %c0_11] : memref<8x128xbf16, #tpu.memory_space<vmem>>, vector<8x128xbf16>
    tpu.vector_store %arg4[%c0_10, %c0_11], %23 {strides = array<i32>} : memref<8x128xbf16, #tpu.memory_space<vmem>>, vector<8x128xbf16>,
    return
  }
  func.func @transform_0(%arg0: i32) -> (i32, i32) {
    %c0_i32 = arith.constant 0 : i32
    %c0_i32_0 = arith.constant 0 : i32
    return %arg0, %c0_i32 : i32, i32
  }
  func.func @transform_1(%arg0: i32) -> (i32, i32) {
    %c0_i32 = arith.constant 0 : i32
    %c0_i32_0 = arith.constant 0 : i32
    %c0_i32_1 = arith.constant 0 : i32
    return %c0_i32, %c0_i32_0 : i32, i32
  }
  func.func @transform_2(%arg0: i32) -> (i32, i32) {
    %c0_i32 = arith.constant 0 : i32
    %c0_i32_0 = arith.constant 0 : i32
    %c0_i32_1 = arith.constant 0 : i32
    return %c0_i32, %c0_i32_0 : i32, i32
  }
  func.func @transform_3(%arg0: i32) -> (i32, i32) {
    %c0_i32 = arith.constant 0 : i32
    %c0_i32_0 = arith.constant 0 : i32
    return %arg0, %c0_i32 : i32, i32
  }
}

</mosaic_0001>

<llo_original>
// kernel: tpu_custom_call.1
$region0: #{tpu_custom_call.1}
  #allocation0 [shape = 'u32[]', space=smem, size = 0x4, offset = 0x4, fixed_abs, tag = 'smem constant byte address 0x4 - core index']
  #allocation1 [shape = 'u32[144,128]{1,0:T(1,128)}', space=vmem, size = 0x12000, scoped, tag = 'internal scratch']
  %s0 = inlined_call_operand.hbm [shape: f32[16,128], index: 0, kind: input, shape index: {}]
  %s1 = inlined_call_operand.hbm [shape: bf16[128,128], index: 1, kind: input, shape index: {}]
  %s2 = inlined_call_operand.vmem [shape: f32[1,128], index: 2, kind: input, shape index: {}]
  %s3 = inlined_call_operand.hbm [shape: bf16[16,128], index: 3, kind: output, shape index: {}]
  %s4 = sld [smem:[#allocation0]]
  $region53: #{tpu_custom_call.1} parent=0
    _
  %s6 = ssub.s32 1, %s4
  %s7 = scalar_select 0, %s6, %s4
  $region1: #{tpu_custom_call.1} parent=0
    #allocation2 [shape = 'u8[8192]{0}', space=vmem, size = 0x2000, scoped, tag = 'input window, operand 0']
    #allocation3 [shape = 's32[2]{0}', space=sflag, size = 0x8, scoped, tag = 'scoped memory for tpu_custom_call.1']
    #allocation4 [shape = 's32[2]{0}', space=sflag, size = 0x8, scoped, tag = 'scoped memory for tpu_custom_call.1']
    #allocation5 [shape = 'u8[32768]{0}', space=vmem, size = 0x8000, scoped, tag = 'input window, operand 1, single buffered']
    #allocation6 [shape = 's32[1]{0}', space=sflag, size = 0x4, scoped, tag = 'scoped memory for tpu_custom_call.1']
    #allocation7 [shape = 'u8[4096]{0}', space=vmem, size = 0x1000, scoped, tag = 'output window, operand 0']
    %8 = vsyncpa [#allocation3], 0
    %s9 = scalar_lea.sflag [#allocation3], 1
    %10 = vsyncpa %s9, 0
    %11 = vsyncpa [#allocation6], 0
    %12 = vsyncpa [#allocation4], 0
    %s13 = scalar_lea.sflag [#allocation4], 1
    %14 = vsyncpa %s13, 0
    loop: start=0, step=1, limit=4
    $region2: #{tpu_custom_call.1} parent=1 // loop_pre_header
      _
    $region3: #{tpu_custom_call.1} parent=1 // loop_header
      %s16 = sphi 0, %s20
      %p17 = scmp.ge.s32.totalorder %s16, 4
      %s26 = sphi 0, %s28
      %s29 = sphi 0, %s26
      %s30 = sphi 0, %s29
      %s46 = sphi 0, %s30
      %s50 = sphi 0, %s50
      %s52 = sphi 0, %s50
      %s53 = sphi 0, %s52
      %s67 = sphi 0, %s53
      %s71 = sphi 0, %s71
      %s73 = sphi 0, %s71
      %s74 = sphi 0, %s73
      %s88 = sphi 0, %s74
      %s94 = sphi 0, %s96
      %s97 = sphi 0, %s94
      %s98 = sphi 0, %s97
      %s114 = sphi 0, %s98
    $region4: #{tpu_custom_call.1} parent=1 // loop_header_branch
      %19 = sbr.rel (%p17) target = $region8
    $region5: #{tpu_custom_call.1} parent=1 // loop_body
      %s21 = ssub.s32 %s16, 1
      %s22 = ssub.s32 %s16, 2
      %s23 = sadd.s32 %s16, 1
      %s24 = ssub.s32 %s16, %s23
      %p25 = scmp.eq.s32.totalorder %s24, 0
      %s27 = sadd.s32 %s26, 1
      %s28 = scalar_select %p25, %s26, %s27
      %p31 = pneg %p25
      %p32 = scmp.eq.s32.totalorder %s16, 1
      %p33 = por %p31, %p32
      %p34 = scmp.ne.s32.totalorder %s26, %s29
      %p35 = scmp.eq.s32.totalorder %s16, 0
      %p36 = por %p34, %p35
      %p37 = scmp.ne.s32.totalorder %s26, %s29
      %p38 = scmp.eq.s32.totalorder %s21, 1
      %p39 = por %p37, %p38
      %p40 = scmp.ne.s32.totalorder %s29, %s30
      %p41 = scmp.eq.s32.totalorder %s21, 0
      %p42 = por %p40, %p41
      %p43 = scmp.ne.s32.totalorder %s29, %s30
      %p44 = scmp.eq.s32.totalorder %s22, 1
      %p45 = por %p43, %p44
      %p47 = scmp.ne.s32.totalorder %s30, %s46
      %p48 = scmp.eq.s32.totalorder %s22, 0
      %p49 = por %p47, %p48
      %s51 = sadd.s32 %s50, 1
      %p54 = scmp.eq.s32.totalorder %s16, 1
      %p55 = scmp.ne.s32.totalorder %s50, %s52
      %p56 = scmp.eq.s32.totalorder %s16, 0
      %p57 = por %p55, %p56
      %p58 = scmp.ne.s32.totalorder %s50, %s52
      %p59 = scmp.eq.s32.totalorder %s21, 1
      %p60 = por %p58, %p59
      %p61 = scmp.ne.s32.totalorder %s52, %s53
      %p62 = scmp.eq.s32.totalorder %s21, 0
      %p63 = por %p61, %p62
      %p64 = scmp.ne.s32.totalorder %s52, %s53
      %p65 = scmp.eq.s32.totalorder %s22, 1
      %p66 = por %p64, %p65
      %p68 = scmp.ne.s32.totalorder %s53, %s67
      %p69 = scmp.eq.s32.totalorder %s22, 0
      %p70 = por %p68, %p69
      %s72 = sadd.s32 %s71, 1
      %p75 = scmp.eq.s32.totalorder %s16, 1
      %p76 = scmp.ne.s32.totalorder %s71, %s73
      %p77 = scmp.eq.s32.totalorder %s16, 0
      %p78 = por %p76, %p77
      %p79 = scmp.ne.s32.totalorder %s71, %s73
      %p80 = scmp.eq.s32.totalorder %s21, 1
      %p81 = por %p79, %p80
      %p82 = scmp.ne.s32.totalorder %s73, %s74
      %p83 = scmp.eq.s32.totalorder %s21, 0
      %p84 = por %p82, %p83
      %p85 = scmp.ne.s32.totalorder %s73, %s74
      %p86 = scmp.eq.s32.totalorder %s22, 1
      %p87 = por %p85, %p86
      %p89 = scmp.ne.s32.totalorder %s74, %s88
      %p90 = scmp.eq.s32.totalorder %s22, 0
      %p91 = por %p89, %p90
      %s92 = ssub.s32 %s16, %s23
      %p93 = scmp.eq.s32.totalorder %s92, 0
      %s95 = sadd.s32 %s94, 1
      %s96 = scalar_select %p93, %s94, %s95
      %p99 = pneg %p93
      %p100 = scmp.eq.s32.totalorder %s16, 1
      %p101 = por %p99, %p100
      %p102 = scmp.ne.s32.totalorder %s94, %s97
      %p103 = scmp.eq.s32.totalorder %s16, 0
      %p104 = por %p102, %p103
      %p105 = scmp.ne.s32.totalorder %s94, %s97
      %p106 = scmp.eq.s32.totalorder %s21, 1
      %p107 = por %p105, %p106
      %p108 = scmp.ne.s32.totalorder %s97, %s98
      %p109 = scmp.eq.s32.totalorder %s21, 0
      %p110 = por %p108, %p109
      %p111 = scmp.ne.s32.totalorder %s97, %s98
      %p112 = scmp.eq.s32.totalorder %s22, 1
      %p113 = por %p111, %p112
      %p115 = scmp.ne.s32.totalorder %s98, %s114
      %p116 = scmp.eq.s32.totalorder %s22, 0
      %p117 = por %p115, %p116
      %p118 = scmp.le.s32.totalorder 1, %s16
      %p119 = scmp.lt.s32.totalorder %s16, 3
      %p120 = pnand %p118, %p119
      %p121 = pneg %p120
      // Predicated region
      $region9: #{tpu_custom_call.1} parent=5 // pred_check
        _
      $region10: #{tpu_custom_call.1} parent=5 // pred_check_branch
        %123 = sbr.rel (%p120) target = $region12
      $region11: #{tpu_custom_call.1} parent=5 // pred_region
        %s124 = ssub.s32 %s16, 1
        // Predicated region
        $region13: #{tpu_custom_call.1} parent=11 // pred_check
          %p125 = pneg %p63
        $region14: #{tpu_custom_call.1} parent=11 // pred_check_branch
          %127 = sbr.rel (%p125) target = $region16
        $region15: #{tpu_custom_call.1} parent=11 // pred_region
          %s129 = ssub.s32 1024, 1024
          %130 = vsyncadd [#allocation6], %s129
          %s131 = sshll.u32 [#allocation5], 4
          %s132 = int_to_ptr.vmem [resolvable:$true] %s131
          %137 = dma.hbm_to_vmem [thread:$0]  %s1, 1024, %s132, [#allocation6], 64, 64, 4
        $region16: #{tpu_custom_call.1} parent=11 // pred_fallthru
          _
        // Predicated region
        $region17: #{tpu_custom_call.1} parent=11 // pred_check
          %p138 = pneg %p84
        $region18: #{tpu_custom_call.1} parent=11 // pred_check_branch
          %140 = sbr.rel (%p138) target = $region20
        $region19: #{tpu_custom_call.1} parent=11 // pred_region
          _
        $region20: #{tpu_custom_call.1} parent=11 // pred_fallthru
          _
      $region12: #{tpu_custom_call.1} parent=5 // pred_fallthru
        _
      %p141 = scmp.lt.s32.totalorder %s16, 2
      // Predicated region
      $region21: #{tpu_custom_call.1} parent=5 // pred_check
        %p142 = pneg %p141
      $region22: #{tpu_custom_call.1} parent=5 // pred_check_branch
        %144 = sbr.rel (%p142) target = $region24
      $region23: #{tpu_custom_call.1} parent=5 // pred_region
        // Predicated region
        $region25: #{tpu_custom_call.1} parent=23 // pred_check
          %p145 = pneg %p36
        $region26: #{tpu_custom_call.1} parent=23 // pred_check_branch
          %147 = sbr.rel (%p145) target = $region28
        $region27: #{tpu_custom_call.1} parent=23 // pred_region
          %s148 = sand.u32 %s26, 1
          %s149 = scalar_lea.sflag [#allocation3], %s148
          %s150 = sand.u32 %s26, 1
          %s151 = smul.addr %s150, 8
          %s152 = scalar_lea.vmem [#allocation2], %s151
          %s154 = ssub.s32 128, 128
          %155 = vsyncadd %s149, %s154
          %s156 = smul.addr %s16, 128
          %s157 = scalar_lea.hbm %s0, %s156
          %s159 = sshll.u32 %s152, 4
          %s160 = int_to_ptr.vmem [resolvable:$true] %s159
          %162 = dma.hbm_to_vmem [thread:$0]  %s157, 128, %s160, %s149
        $region28: #{tpu_custom_call.1} parent=23 // pred_fallthru
          _
      $region24: #{tpu_custom_call.1} parent=5 // pred_fallthru
        _
      %p163 = scmp.le.s32.totalorder 1, %s16
      %p164 = scmp.lt.s32.totalorder %s16, 3
      %p165 = pnand %p163, %p164
      %p166 = pneg %p165
      // Predicated region
      $region29: #{tpu_custom_call.1} parent=5 // pred_check
        _
      $region30: #{tpu_custom_call.1} parent=5 // pred_check_branch
        %168 = sbr.rel (%p165) target = $region32
      $region31: #{tpu_custom_call.1} parent=5 // pred_region
        %s169 = ssub.s32 %s16, 1
        %s170 = sand.u32 %s29, 1
        %s171 = scalar_lea.sflag [#allocation3], %s170
        %s172 = sand.u32 %s29, 1
        %s173 = smul.addr %s172, 8
        %s174 = scalar_lea.vmem [#allocation2], %s173
        // Predicated region
        $region33: #{tpu_custom_call.1} parent=31 // pred_check
          %p175 = pneg %p42
        $region34: #{tpu_custom_call.1} parent=31 // pred_check_branch
          %177 = sbr.rel (%p175) target = $region36
        $region35: #{tpu_custom_call.1} parent=31 // pred_region
          %178 = dma.done %s171, 128
        $region36: #{tpu_custom_call.1} parent=31 // pred_fallthru
          _
        // Predicated region
        $region37: #{tpu_custom_call.1} parent=31 // pred_check
          %p179 = pneg %p63
        $region38: #{tpu_custom_call.1} parent=31 // pred_check_branch
          %181 = sbr.rel (%p179) target = $region40
        $region39: #{tpu_custom_call.1} parent=31 // pred_region
          %182 = dma.done [#allocation6], 1024
        $region40: #{tpu_custom_call.1} parent=31 // pred_fallthru
          _
        %s183 = sand.u32 %s29, 1
        %s184 = scalar_lea.sflag [#allocation3], %s183
        %s185 = sand.u32 %s29, 1
        %s186 = smul.addr %s185, 8
        %s187 = scalar_lea.vmem [#allocation2], %s186
        %p188 = pneg %p42
        %p189 = pneg %p39
        %p190 = pneg %p63
        %p191 = pneg %p60
        %p192 = pneg %p84
        %p193 = pneg %p81
        %p194 = pneg %p110
        %p195 = pneg %p107
        %s196 = sand.u32 %s97, 1
        %s197 = scalar_lea.sflag [#allocation4], %s196
        %s198 = sand.u32 %s97, 1
        %s199 = smul.addr %s198, 4
        %s200 = scalar_lea.vmem [#allocation7], %s199
        %v202 = vld [vmem:[%s174] sm:$0xff]
        %203 = vadd.xlane.f32.xlu0 %v202
        %v204 = vpop.xlane.xlu0 %203
        %v205 = vrcp.pop 128.0
        %v206 = vmul.f32 %v204, %v205
        %v207 = vsub.f32 %v202, %v206
        %v208 = vmul.f32 %v207, %v207
        %209 = vadd.xlane.f32.xlu0 %v208
        %v210 = vpop.xlane.xlu0 %209
        %v211 = vmul.f32 %v210, %v205
        %v212 = vadd.f32 %v211, 1e-05
        %v213 = vrsqrt.pop %v212
        %v214 = vmul.f32 %v207, %v213
        %v215 = vpack.c.bf16 %v214, %v214
        %v216 = vld [vmem:[#allocation5] sm:$0xf]
        %v217 = vld [vmem:[#allocation5 + $0x4] sm:$0xf]
        %v218 = vld [vmem:[#allocation5 + $0x8] sm:$0xf]
        %v219 = vld [vmem:[#allocation5 + $0xc] sm:$0xf]
        %v220 = vld [vmem:[#allocation5 + $0x10] sm:$0xf]
        %v221 = vld [vmem:[#allocation5 + $0x14] sm:$0xf]
        %v222 = vld [vmem:[#allocation5 + $0x18] sm:$0xf]
        %v223 = vld [vmem:[#allocation5 + $0x1c] sm:$0xf]
        %v224 = vld [vmem:[#allocation5 + $0x20] sm:$0xf]
        %v225 = vld [vmem:[#allocation5 + $0x24] sm:$0xf]
        %v226 = vld [vmem:[#allocation5 + $0x28] sm:$0xf]
        %v227 = vld [vmem:[#allocation5 + $0x2c] sm:$0xf]
        %v228 = vld [vmem:[#allocation5 + $0x30] sm:$0xf]
        %v229 = vld [vmem:[#allocation5 + $0x34] sm:$0xf]
        %v230 = vld [vmem:[#allocation5 + $0x38] sm:$0xf]
        %v231 = vld [vmem:[#allocation5 + $0x3c] sm:$0xf]
        %v232 = vld [vmem:[%s2] sm:$0x1]
        %v234 = vlaneseq
        %v235 = vshrl.u32 %v234, 7
        %v236 = vsub.s32 0, %v235
        %v237 = vrot.slane %v232, %v236
        %v255 = vunpack.c.l.b16 %v216
        %v256 = vunpack.c.l.b16 %v217
        %v257 = vunpack.c.l.b16 %v218
        %v258 = vunpack.c.l.b16 %v219
        %v259 = vunpack.c.l.b16 %v220
        %v260 = vunpack.c.l.b16 %v221
        %v261 = vunpack.c.l.b16 %v222
        %v262 = vunpack.c.l.b16 %v223
        %v263 = vunpack.c.l.b16 %v224
        %v264 = vunpack.c.l.b16 %v225
        %v265 = vunpack.c.l.b16 %v226
        %v266 = vunpack.c.l.b16 %v227
        %v267 = vunpack.c.l.b16 %v228
        %v268 = vunpack.c.l.b16 %v229
        %v269 = vunpack.c.l.b16 %v230
        %v270 = vunpack.c.l.b16 %v231
        %v271 = vpack.c.b16 %v256, %v255
        %v272 = vpack.c.b16 %v258, %v257
        %v273 = vpack.c.b16 %v260, %v259
        %v274 = vpack.c.b16 %v262, %v261
        %v275 = vpack.c.b16 %v264, %v263
        %v276 = vpack.c.b16 %v266, %v265
        %v277 = vpack.c.b16 %v268, %v267
        %v278 = vpack.c.b16 %v270, %v269
        %287 = vmatprep.subr.bf16.mxu0 0
        %288 = vmatpush1.bf16.msra.mxu0 %v278
        %289 = vmatprep.subr.bf16.mxu0 0
        %290 = vmatpush1.bf16.msra.mxu0 %v277
        %291 = vmatprep.subr.bf16.mxu0 0
        %292 = vmatpush1.bf16.msra.mxu0 %v276
        %293 = vmatprep.subr.bf16.mxu0 0
        %294 = vmatpush1.bf16.msra.mxu0 %v275
        %295 = vmatprep.subr.bf16.mxu0 0
        %296 = vmatpush1.bf16.msra.mxu0 %v274
        %297 = vmatprep.subr.bf16.mxu0 0
        %298 = vmatpush1.bf16.msra.mxu0 %v273
        %299 = vmatprep.subr.bf16.mxu0 0
        %300 = vmatpush1.bf16.msra.mxu0 %v272
        %301 = vmatprep.subr.bf16.mxu0 0
        %302 = vmatpush1.bf16.msra.mxu0 %v271
        %303 = vmatprep.subr.bf16.mxu0 0
        %304 = vmatpush2.bf16.msra.mxu0 0
        %305 = vmatprep.subr.bf16.mxu0 0
        %306 = vmatpush2.bf16.msra.mxu0 0
        %307 = vmatprep.subr.bf16.mxu0 0
        %308 = vmatpush2.bf16.msra.mxu0 0
        %309 = vmatprep.subr.bf16.mxu0 0
        %310 = vmatpush2.bf16.msra.mxu0 0
        %311 = vmatprep.subr.bf16.mxu0 0
        %312 = vmatpush2.bf16.msra.mxu0 0
        %313 = vmatprep.subr.bf16.mxu0 0
        %314 = vmatpush2.bf16.msra.mxu0 0
        %315 = vmatprep.subr.bf16.mxu0 0
        %316 = vmatpush2.bf16.msra.mxu0 0
        %317 = vmatprep.subr.bf16.mxu0 0
        %318 = vmatpush2.bf16.msra.mxu0 0
        %319 = vmatprep.mubr.bf16.mxu0 0
        %320 = vmatmul.mubr.bf16.gmra.mxu0 %v215
        %v321 = vpop.f32.mrf.mxu0
        %v322 = vadd.f32 %v237, %v321
        %v323 = vpop.f32.mrf.mxu0
        %v324 = vpop.f32.mrf.mxu0
        %v325 = vpop.f32.mrf.mxu0
        %326 = vdwg.mxu0
        %v327 = vpack.c.bf16 %v322, %v322
        %328 = vst [vmem:[%s200] sm:$0xf] %v327
        %s329 = sand.u32 %s97, 1
        %s330 = scalar_lea.sflag [#allocation4], %s329
        %s331 = sand.u32 %s97, 1
        %s332 = smul.addr %s331, 4
        %s333 = scalar_lea.vmem [#allocation7], %s332
        // Predicated region
        $region41: #{tpu_custom_call.1} parent=31 // pred_check
          %p334 = pneg %p107
        $region42: #{tpu_custom_call.1} parent=31 // pred_check_branch
          %336 = sbr.rel (%p334) target = $region44
        $region43: #{tpu_custom_call.1} parent=31 // pred_region
          %s338 = ssub.s32 64, 64
          %339 = vsyncadd %s330, %s338
          %s340 = smul.addr %s21, 64
          %s341 = scalar_lea.hbm %s3, %s340
          %s343 = sshll.u32 %s333, 4
          %s344 = int_to_ptr.vmem [resolvable:$true] %s343
          %346 = dma.vmem_to_hbm [thread:$0]  %s344, 64, %s341, %s330
        $region44: #{tpu_custom_call.1} parent=31 // pred_fallthru
          _
      $region32: #{tpu_custom_call.1} parent=5 // pred_fallthru
        _
      %p347 = scmp.le.s32.totalorder 2, %s16
      // Predicated region
      $region45: #{tpu_custom_call.1} parent=5 // pred_check
        %p348 = pneg %p347
      $region46: #{tpu_custom_call.1} parent=5 // pred_check_branch
        %350 = sbr.rel (%p348) target = $region48
      $region47: #{tpu_custom_call.1} parent=5 // pred_region
        %s351 = ssub.s32 %s16, 2
        // Predicated region
        $region49: #{tpu_custom_call.1} parent=47 // pred_check
          %p352 = pneg %p113
        $region50: #{tpu_custom_call.1} parent=47 // pred_check_branch
          %354 = sbr.rel (%p352) target = $region52
        $region51: #{tpu_custom_call.1} parent=47 // pred_region
          %s355 = sand.u32 %s98, 1
          %s356 = scalar_lea.sflag [#allocation4], %s355
          %s357 = sand.u32 %s98, 1
          %s358 = smul.addr %s357, 4
          %s359 = scalar_lea.vmem [#allocation7], %s358
          %360 = dma.done %s356, 64
        $region52: #{tpu_custom_call.1} parent=47 // pred_fallthru
          _
      $region48: #{tpu_custom_call.1} parent=5 // pred_fallthru
        _
    $region6: #{tpu_custom_call.1} parent=1 // loop_footer
      %s20 = sadd.s32 1, %s16
    $region7: #{tpu_custom_call.1} parent=1 // loop_footer_branch
      %15 = sbr.rel target = $region3
    $region8: #{tpu_custom_call.1} parent=1 // loop_exit
      _
    %361 = vsyncpa [#allocation3], 1
    %s362 = scalar_lea.sflag [#allocation3], 1
    %363 = vsyncpa %s362, 1
    %364 = vsyncpa [#allocation6], 1
    %365 = vsyncpa [#allocation4], 1
    %s366 = scalar_lea.sflag [#allocation4], 1
    %367 = vsyncpa %s366, 1

</llo_original>
